<compile_context>
chip_gen: v5e
topology: v5e:2x2
jax: 0.10.0
libtpu: 0.0.40
codegen_flags: <defaults>
</compile_context>

<pallas_src>
import jax
import jax.numpy as jnp
from jax.experimental import pallas as pl
from jax.experimental.pallas import tpu as pltpu


# ---------------------------------------------------------------------------
# Kernel 1: conv as one im2col matmul per block + per-block per-channel
#           sum / sumsq partials (for BatchNorm batch statistics).
#   p_ref   : (K_tot, M_tile)        im2col patches block (lane-dense)
#   w_ref   : (C_out, K_tot)         folded conv weight (resident across steps)
#   y_ref   : (C_out, M_tile)        conv output block (lane-dense)
#   psum_ref: (1, C_out, 128)        per-block partial channel sums
#   psq_ref : (1, C_out, 128)        per-block partial channel sums of squares
# ---------------------------------------------------------------------------
def _conv_stats_kernel(p_ref, w_ref, y_ref, psum_ref, psq_ref):
    y = jnp.dot(w_ref[...], p_ref[...], preferred_element_type=jnp.float32)
    y_ref[...] = y.astype(y_ref.dtype)
    s = jnp.sum(y, axis=1, keepdims=True)        # (C_out, 1)  lane reduce (XLU)
    sq = jnp.sum(y * y, axis=1, keepdims=True)   # (C_out, 1)
    psum_ref[...] = jnp.broadcast_to(s[None], psum_ref.shape)
    psq_ref[...] = jnp.broadcast_to(sq[None], psq_ref.shape)


# ---------------------------------------------------------------------------
# Kernel 2: BatchNorm normalize (streaming elementwise):
#   out = y * scale + shift, scale/shift per channel broadcast over lanes.
# ---------------------------------------------------------------------------
def _bn_apply_kernel(y_ref, scale_ref, shift_ref, o_ref):
    o_ref[...] = y_ref[...] * scale_ref[...] + shift_ref[...]


# ---------------------------------------------------------------------------
# Wrapper: ConvLayer.forward
# ---------------------------------------------------------------------------
def conv_layer_forward(x_ncdhw, conv_w, gamma, beta, *, stride=1, padding=0,
                       eps=1e-5, m_tile=512):
    """x_ncdhw: (N, C_in, D, H, W).  conv_w: (C_out, C_in, 1, KH, KW) (torch layout).

    Returns (N, C_out, D, H_out, W_out), matching BatchNorm3d(Conv3d(x)) in training
    mode (batch statistics, biased variance), bias=False.
    """
    assert m_tile % 128 == 0
    N, C_in, D, H, W = x_ncdhw.shape
    C_out, C_in_w, KD, KH, KW = conv_w.shape
    assert C_in_w == C_in and KD == 1
    H_out = (H + 2 * padding - KH) // stride + 1
    W_out = (W + 2 * padding - KW) // stride + 1
    B = N * D
    M = B * H_out * W_out
    K_tot = KH * KW * C_in

    # --- layout plumbing + im2col (XLA glue) ---
    # Depth is a pure batch axis for a (1,k,k) kernel with stride (1,s,s), pad (0,p,p).
    x = jnp.transpose(x_ncdhw, (0, 2, 3, 4, 1)).reshape(B, H, W, C_in)
    x = jnp.pad(x, ((0, 0), (padding, padding), (padding, padding), (0, 0)))
    taps = []
    for kh in range(KH):
        for kw in range(KW):
            taps.append(x[:, kh:kh + stride * H_out:stride,
                          kw:kw + stride * W_out:stride, :])
    patches = jnp.concatenate(taps, axis=-1)          # (B, H_out, W_out, KH*KW*C_in)
    patches = patches.reshape(M, K_tot).T             # (K_tot, M) — lane axis = pixels

    # Pad M to a multiple of m_tile. Zero patches produce zero conv outputs, which
    # contribute nothing to sum/sumsq; stats divide by the real count M.
    m_tile = min(m_tile, -(-M // 128) * 128)
    M_pad = -(-M // m_tile) * m_tile
    num_blocks = M_pad // m_tile
    if M_pad != M:
        patches = jnp.pad(patches, ((0, 0), (0, M_pad - M)))

    # Weight folded to (C_out, KH*KW*C_in) with the same (kh, kw, ci) ordering.
    w = jnp.transpose(conv_w[:, :, 0, :, :], (0, 2, 3, 1)).reshape(C_out, K_tot)
    w = w.astype(jnp.float32)
    patches = patches.astype(jnp.float32)

    cparams = pltpu.CompilerParams(
        dimension_semantics=("parallel",),            # shards across v7x's 2 TCs
        vmem_limit_bytes=32 * 1024 * 1024)

    y, psum, psq = pl.pallas_call(
        _conv_stats_kernel,
        out_shape=(
            jax.ShapeDtypeStruct((C_out, M_pad), jnp.float32),
            jax.ShapeDtypeStruct((num_blocks, C_out, 128), jnp.float32),
            jax.ShapeDtypeStruct((num_blocks, C_out, 128), jnp.float32),
        ),
        grid=(num_blocks,),
        in_specs=[
            pl.BlockSpec((K_tot, m_tile), lambda b: (0, b)),
            pl.BlockSpec((C_out, K_tot), lambda b: (0, 0)),
        ],
        out_specs=(
            pl.BlockSpec((C_out, m_tile), lambda b: (0, b)),
            pl.BlockSpec((1, C_out, 128), lambda b: (b, 0, 0)),
            pl.BlockSpec((1, C_out, 128), lambda b: (b, 0, 0)),
        ),
        compiler_params=cparams,
    )(patches, w)

    # --- BN statistics finalization (tiny per-channel scalar glue) ---
    count = jnp.float32(M)
    csum = jnp.sum(psum[:, :, 0], axis=0)             # (C_out,)
    csq = jnp.sum(psq[:, :, 0], axis=0)               # (C_out,)
    mean = csum / count
    var = csq / count - mean * mean                   # biased variance (torch training BN)
    rstd = jax.lax.rsqrt(var + eps)
    scale = (gamma * rstd).reshape(C_out, 1).astype(jnp.float32)
    shift = (beta - mean * gamma * rstd).reshape(C_out, 1).astype(jnp.float32)

    out = pl.pallas_call(
        _bn_apply_kernel,
        out_shape=jax.ShapeDtypeStruct((C_out, M_pad), jnp.float32),
        grid=(num_blocks,),
        in_specs=[
            pl.BlockSpec((C_out, m_tile), lambda b: (0, b)),
            pl.BlockSpec((C_out, 1), lambda b: (0, 0)),
            pl.BlockSpec((C_out, 1), lambda b: (0, 0)),
        ],
        out_specs=pl.BlockSpec((C_out, m_tile), lambda b: (0, b)),
        input_output_aliases={0: 0},                  # write result over y's buffer
        compiler_params=cparams,
    )(y, scale, shift)

    # --- back to NCDHW ---
    out = out[:, :M].reshape(C_out, N, D, H_out, W_out)
    return jnp.transpose(out, (1, 0, 2, 3, 4))


# ---------------------------------------------------------------------------
# Pure-JAX reference (torch semantics) for correctness checking.
# ---------------------------------------------------------------------------
def _reference(x_ncdhw, conv_w, gamma, beta, *, stride=1, padding=0, eps=1e-5):
    N, C_in, D, H, W = x_ncdhw.shape
    C_out = conv_w.shape[0]
    x2d = jnp.transpose(x_ncdhw, (0, 2, 1, 3, 4)).reshape(N * D, C_in, H, W)
    w2d = conv_w[:, :, 0, :, :]  # (C_out, C_in, KH, KW)
    y = jax.lax.conv_general_dilated(
        x2d, w2d, window_strides=(stride, stride),
        padding=[(padding, padding), (padding, padding)],
        dimension_numbers=("NCHW", "OIHW", "NCHW"))
    _, _, H_out, W_out = y.shape
    y = y.reshape(N, D, C_out, H_out, W_out).transpose(0, 2, 1, 3, 4)  # NCDHW
    mean = jnp.mean(y, axis=(0, 2, 3, 4), keepdims=True)
    var = jnp.mean((y - mean) ** 2, axis=(0, 2, 3, 4), keepdims=True)
    y = (y - mean) * jax.lax.rsqrt(var + eps)
    return y * gamma.reshape(1, -1, 1, 1, 1) + beta.reshape(1, -1, 1, 1, 1)


if __name__ == "__main__":
    key = jax.random.PRNGKey(0)
    N, C_in, D, H, W = 2, 4, 3, 16, 16
    C_out, K, stride, padding = 8, 3, 1, 1

    k_x, k_w = jax.random.split(key)
    x = jax.random.normal(k_x, (N, C_in, D, H, W), dtype=jnp.float32)
    # Conv3d weight, torch layout (C_out, C_in, 1, KH, KW), deterministic init.
    conv_w = 0.1 * jax.random.normal(k_w, (C_out, C_in, 1, K, K), dtype=jnp.float32)
    # BatchNorm3d default affine params.
    gamma = jnp.ones((C_out,), jnp.float32)
    beta = jnp.zeros((C_out,), jnp.float32)

    out = conv_layer_forward(x, conv_w, gamma, beta, stride=stride, padding=padding)
    out = jax.block_until_ready(out)

    ref = _reference(x, conv_w, gamma, beta, stride=stride, padding=padding)
    assert out.shape == ref.shape == (N, C_out, D, H, W)
    assert jnp.allclose(out, ref, rtol=1e-3, atol=1e-3), (
        float(jnp.max(jnp.abs(out - ref))))

    print("KERNEL_OK")
</pallas_src>

<mosaic_0001>
module attributes {stable_mosaic.version = 11 : i64} {
  func.func @_conv_stats_kernel(%arg0: i32, %arg1: memref<36x512xf32, #tpu.memory_space<vmem>>, %arg2: memref<8x36xf32, #tpu.memory_space<vmem>>, %arg3: memref<8x512xf32, #tpu.memory_space<vmem>>, %arg4: memref<1x8x128xf32, #tpu.memory_space<vmem>>, %arg5: memref<1x8x128xf32, #tpu.memory_space<vmem>>) attributes {dimension_semantics = [#tpu.dimension_semantics<parallel>], iteration_bounds = array<i64: 3>, scalar_prefetch = 0 : i64, scratch_operands = 0 : i64, tpu.core_type = #tpu.core_type<tc>, window_params = [{transform_indices = @transform_0, window_bounds = array<i64: 36, 512>}, {pipeline_mode = #tpu.pipeline_mode<synchronous>, transform_indices = @transform_1, window_bounds = array<i64: 8, 36>}, {transform_indices = @transform_2, window_bounds = array<i64: 8, 512>}, {transform_indices = @transform_3, window_bounds = array<i64: 1, 8, 128>}, {transform_indices = @transform_4, window_bounds = array<i64: 1, 8, 128>}]} {
    %c0 = arith.constant 0 : index
    %c0_0 = arith.constant 0 : index
    %0 = vector.load %arg2[%c0, %c0_0] : memref<8x36xf32, #tpu.memory_space<vmem>>, vector<8x36xf32>
    %c0_1 = arith.constant 0 : index
    %c0_2 = arith.constant 0 : index
    %1 = vector.load %arg1[%c0_1, %c0_2] : memref<36x512xf32, #tpu.memory_space<vmem>>, vector<36x512xf32>
    %cst = arith.constant dense<0.000000e+00> : vector<8x512xf32>
    %2 = tpu.matmul %0, %1, %cst {dimension_numbers = #tpu.dot_dimension_numbers<[1], [0], [0], [1], [0, 0, 1, 1], [], []>} : vector<8x36xf32>, vector<36x512xf32>, vector<8x512xf32> -> vector<8x512xf32>
    %c0_3 = arith.constant 0 : index
    %c0_4 = arith.constant 0 : index
    %3 = vector.load %arg3[%c0_3, %c0_4] : memref<8x512xf32, #tpu.memory_space<vmem>>, vector<8x512xf32>
    tpu.vector_store %arg3[%c0_3, %c0_4], %2 {strides = array<i32>} : memref<8x512xf32, #tpu.memory_space<vmem>>, vector<8x512xf32>,
    %cst_5 = arith.constant dense<0.000000e+00> : vector<8xf32>
    %4 = vector.multi_reduction <add>, %2, %cst_5 [1] : vector<8x512xf32> to vector<8xf32>
    %5 = vector.shape_cast %4 : vector<8xf32> to vector<8x1xf32>
    %6 = arith.mulf %2, %2 : vector<8x512xf32>
    %cst_6 = arith.constant dense<0.000000e+00> : vector<8xf32>
    %7 = vector.multi_reduction <add>, %6, %cst_6 [1] : vector<8x512xf32> to vector<8xf32>
    %8 = vector.shape_cast %7 : vector<8xf32> to vector<8x1xf32>
    %9 = vector.shape_cast %5 : vector<8x1xf32> to vector<1x8x1xf32>
    %10 = vector.shape_cast %9 : vector<1x8x1xf32> to vector<1x8x1xf32>
    %11 = vector.broadcast %10 : vector<1x8x1xf32> to vector<1x8x128xf32>
    %c0_7 = arith.constant 0 : index
    %c0_8 = arith.constant 0 : index
    %c0_9 = arith.constant 0 : index
    %12 = vector.load %arg4[%c0_7, %c0_8, %c0_9] : memref<1x8x128xf32, #tpu.memory_space<vmem>>, vector<1x8x128xf32>
    tpu.vector_store %arg4[%c0_7, %c0_8, %c0_9], %11 {strides = array<i32>} : memref<1x8x128xf32, #tpu.memory_space<vmem>>, vector<1x8x128xf32>,
    %13 = vector.shape_cast %8 : vector<8x1xf32> to vector<1x8x1xf32>
    %14 = vector.shape_cast %13 : vector<1x8x1xf32> to vector<1x8x1xf32>
    %15 = vector.broadcast %14 : vector<1x8x1xf32> to vector<1x8x128xf32>
    %c0_10 = arith.constant 0 : index
    %c0_11 = arith.constant 0 : index
    %c0_12 = arith.constant 0 : index
    %16 = vector.load %arg5[%c0_10, %c0_11, %c0_12] : memref<1x8x128xf32, #tpu.memory_space<vmem>>, vector<1x8x128xf32>
    tpu.vector_store %arg5[%c0_10, %c0_11, %c0_12], %15 {strides = array<i32>} : memref<1x8x128xf32, #tpu.memory_space<vmem>>, vector<1x8x128xf32>,
    return
  }
  func.func @transform_0(%arg0: i32) -> (i32, i32) {
    %c0_i32 = arith.constant 0 : i32
    %c0_i32_0 = arith.constant 0 : i32
    return %c0_i32, %arg0 : i32, i32
  }
  func.func @transform_1(%arg0: i32) -> (i32, i32) {
    %c0_i32 = arith.constant 0 : i32
    %c0_i32_0 = arith.constant 0 : i32
    %c0_i32_1 = arith.constant 0 : i32
    return %c0_i32, %c0_i32_0 : i32, i32
  }
  func.func @transform_2(%arg0: i32) -> (i32, i32) {
    %c0_i32 = arith.constant 0 : i32
    %c0_i32_0 = arith.constant 0 : i32
    return %c0_i32, %arg0 : i32, i32
  }
  func.func @transform_3(%arg0: i32) -> (i32, i32, i32) {
    %c0_i32 = arith.constant 0 : i32
    %c0_i32_0 = arith.constant 0 : i32
    %c0_i32_1 = arith.constant 0 : i32
    return %arg0, %c0_i32, %c0_i32_0 : i32, i32, i32
  }
  func.func @transform_4(%arg0: i32) -> (i32, i32, i32) {
    %c0_i32 = arith.constant 0 : i32
    %c0_i32_0 = arith.constant 0 : i32
    %c0_i32_1 = arith.constant 0 : i32
    return %arg0, %c0_i32, %c0_i32_0 : i32, i32, i32
  }
}

</mosaic_0001>

<llo_original>
// kernel: tpu_custom_call.1
$region0: #{tpu_custom_call.1}
  #allocation0 [shape = 'u32[]', space=smem, size = 0x4, offset = 0x4, fixed_abs, tag = 'smem constant byte address 0x4 - core index']
  #allocation1 [shape = 'u32[72,128]{1,0:T(1,128)}', space=vmem, size = 0x9000, scoped, tag = 'internal scratch']
  %s0 = inlined_call_operand.hbm [shape: f32[36,1536], index: 0, kind: input, shape index: {}]
  %s1 = inlined_call_operand.hbm [shape: f32[8,36], index: 1, kind: input, shape index: {}]
  %s2 = inlined_call_operand.hbm [shape: f32[8,1536], index: 2, kind: output, shape index: {0}]
  %s3 = inlined_call_operand.hbm [shape: f32[3,8,128], index: 3, kind: output, shape index: {1}]
  %s4 = inlined_call_operand.hbm [shape: f32[3,8,128], index: 4, kind: output, shape index: {2}]
  %5 = xla_tuple %s2, %s3, %s4
  %s6 = sld [smem:[#allocation0]]
  $region65: #{tpu_custom_call.1} parent=0
    _
  %s8 = ssub.s32 1, %s6
  %s9 = scalar_select 0, %s8, %s6
  $region1: #{tpu_custom_call.1} parent=0
    #allocation2 [shape = 'u8[163840]{0}', space=vmem, size = 0x28000, scoped, tag = 'input window, operand 0']
    #allocation3 [shape = 's32[2]{0}', space=sflag, size = 0x8, scoped, tag = 'scoped memory for tpu_custom_call.1']
    #allocation4 [shape = 's32[2]{0}', space=sflag, size = 0x8, scoped, tag = 'scoped memory for tpu_custom_call.1']
    #allocation5 [shape = 'u8[4096]{0}', space=vmem, size = 0x1000, scoped, tag = 'input window, operand 1, single buffered']
    #allocation6 [shape = 's32[1]{0}', space=sflag, size = 0x4, scoped, tag = 'scoped memory for tpu_custom_call.1']
    #allocation7 [shape = 'u8[32768]{0}', space=vmem, size = 0x8000, scoped, tag = 'output window, operand 0']
    #allocation8 [shape = 'u8[8192]{0}', space=vmem, size = 0x2000, scoped, tag = 'output window, operand 1']
    #allocation9 [shape = 's32[2]{0}', space=sflag, size = 0x8, scoped, tag = 'scoped memory for tpu_custom_call.1']
    #allocation10 [shape = 'u8[8192]{0}', space=vmem, size = 0x2000, scoped, tag = 'output window, operand 2']
    %10 = vsyncpa [#allocation3], 0
    %s11 = scalar_lea.sflag [#allocation3], 1
    %12 = vsyncpa %s11, 0
    %13 = vsyncpa [#allocation6], 0
    %14 = vsyncpa [#allocation4], 0
    %s15 = scalar_lea.sflag [#allocation4], 1
    %16 = vsyncpa %s15, 0
    %17 = vsyncpa [#allocation9], 0
    %s18 = scalar_lea.sflag [#allocation9], 1
    %19 = vsyncpa %s18, 0
    loop: start=0, step=1, limit=5
    $region2: #{tpu_custom_call.1} parent=1 // loop_pre_header
      _
    $region3: #{tpu_custom_call.1} parent=1 // loop_header
      %s21 = sphi 0, %s25
      %p22 = scmp.ge.s32.totalorder %s21, 5
      %s31 = sphi 0, %s33
      %s34 = sphi 0, %s31
      %s35 = sphi 0, %s34
      %s51 = sphi 0, %s35
      %s55 = sphi 0, %s55
      %s57 = sphi 0, %s55
      %s58 = sphi 0, %s57
      %s72 = sphi 0, %s58
      %s78 = sphi 0, %s80
      %s81 = sphi 0, %s78
      %s82 = sphi 0, %s81
      %s98 = sphi 0, %s82
      %s104 = sphi 0, %s106
      %s107 = sphi 0, %s104
      %s108 = sphi 0, %s107
      %s124 = sphi 0, %s108
      %s130 = sphi 0, %s132
      %s133 = sphi 0, %s130
      %s134 = sphi 0, %s133
      %s150 = sphi 0, %s134
    $region4: #{tpu_custom_call.1} parent=1 // loop_header_branch
      %24 = sbr.rel (%p22) target = $region8
    $region5: #{tpu_custom_call.1} parent=1 // loop_body
      %s26 = ssub.s32 %s21, 1
      %s27 = ssub.s32 %s21, 2
      %s28 = sadd.s32 %s21, 1
      %s29 = ssub.s32 %s21, %s28
      %p30 = scmp.eq.s32.totalorder %s29, 0
      %s32 = sadd.s32 %s31, 1
      %s33 = scalar_select %p30, %s31, %s32
      %p36 = pneg %p30
      %p37 = scmp.eq.s32.totalorder %s21, 2
      %p38 = por %p36, %p37
      %p39 = scmp.ne.s32.totalorder %s31, %s34
      %p40 = scmp.eq.s32.totalorder %s21, 0
      %p41 = por %p39, %p40
      %p42 = scmp.ne.s32.totalorder %s31, %s34
      %p43 = scmp.eq.s32.totalorder %s26, 2
      %p44 = por %p42, %p43
      %p45 = scmp.ne.s32.totalorder %s34, %s35
      %p46 = scmp.eq.s32.totalorder %s26, 0
      %p47 = por %p45, %p46
      %p48 = scmp.ne.s32.totalorder %s34, %s35
      %p49 = scmp.eq.s32.totalorder %s27, 2
      %p50 = por %p48, %p49
      %p52 = scmp.ne.s32.totalorder %s35, %s51
      %p53 = scmp.eq.s32.totalorder %s27, 0
      %p54 = por %p52, %p53
      %s56 = sadd.s32 %s55, 1
      %p59 = scmp.eq.s32.totalorder %s21, 2
      %p60 = scmp.ne.s32.totalorder %s55, %s57
      %p61 = scmp.eq.s32.totalorder %s21, 0
      %p62 = por %p60, %p61
      %p63 = scmp.ne.s32.totalorder %s55, %s57
      %p64 = scmp.eq.s32.totalorder %s26, 2
      %p65 = por %p63, %p64
      %p66 = scmp.ne.s32.totalorder %s57, %s58
      %p67 = scmp.eq.s32.totalorder %s26, 0
      %p68 = por %p66, %p67
      %p69 = scmp.ne.s32.totalorder %s57, %s58
      %p70 = scmp.eq.s32.totalorder %s27, 2
      %p71 = por %p69, %p70
      %p73 = scmp.ne.s32.totalorder %s58, %s72
      %p74 = scmp.eq.s32.totalorder %s27, 0
      %p75 = por %p73, %p74
      %s76 = ssub.s32 %s21, %s28
      %p77 = scmp.eq.s32.totalorder %s76, 0
      %s79 = sadd.s32 %s78, 1
      %s80 = scalar_select %p77, %s78, %s79
      %p83 = pneg %p77
      %p84 = scmp.eq.s32.totalorder %s21, 2
      %p85 = por %p83, %p84
      %p86 = scmp.ne.s32.totalorder %s78, %s81
      %p87 = scmp.eq.s32.totalorder %s21, 0
      %p88 = por %p86, %p87
      %p89 = scmp.ne.s32.totalorder %s78, %s81
      %p90 = scmp.eq.s32.totalorder %s26, 2
      %p91 = por %p89, %p90
      %p92 = scmp.ne.s32.totalorder %s81, %s82
      %p93 = scmp.eq.s32.totalorder %s26, 0
      %p94 = por %p92, %p93
      %p95 = scmp.ne.s32.totalorder %s81, %s82
      %p96 = scmp.eq.s32.totalorder %s27, 2
      %p97 = por %p95, %p96
      %p99 = scmp.ne.s32.totalorder %s82, %s98
      %p100 = scmp.eq.s32.totalorder %s27, 0
      %p101 = por %p99, %p100
      %s102 = ssub.s32 %s21, %s28
      %p103 = scmp.eq.s32.totalorder %s102, 0
      %s105 = sadd.s32 %s104, 1
      %s106 = scalar_select %p103, %s104, %s105
      %p109 = pneg %p103
      %p110 = scmp.eq.s32.totalorder %s21, 2
      %p111 = por %p109, %p110
      %p112 = scmp.ne.s32.totalorder %s104, %s107
      %p113 = scmp.eq.s32.totalorder %s21, 0
      %p114 = por %p112, %p113
      %p115 = scmp.ne.s32.totalorder %s104, %s107
      %p116 = scmp.eq.s32.totalorder %s26, 2
      %p117 = por %p115, %p116
      %p118 = scmp.ne.s32.totalorder %s107, %s108
      %p119 = scmp.eq.s32.totalorder %s26, 0
      %p120 = por %p118, %p119
      %p121 = scmp.ne.s32.totalorder %s107, %s108
      %p122 = scmp.eq.s32.totalorder %s27, 2
      %p123 = por %p121, %p122
      %p125 = scmp.ne.s32.totalorder %s108, %s124
      %p126 = scmp.eq.s32.totalorder %s27, 0
      %p127 = por %p125, %p126
      %s128 = ssub.s32 %s21, %s28
      %p129 = scmp.eq.s32.totalorder %s128, 0
      %s131 = sadd.s32 %s130, 1
      %s132 = scalar_select %p129, %s130, %s131
      %p135 = pneg %p129
      %p136 = scmp.eq.s32.totalorder %s21, 2
      %p137 = por %p135, %p136
      %p138 = scmp.ne.s32.totalorder %s130, %s133
      %p139 = scmp.eq.s32.totalorder %s21, 0
      %p140 = por %p138, %p139
      %p141 = scmp.ne.s32.totalorder %s130, %s133
      %p142 = scmp.eq.s32.totalorder %s26, 2
      %p143 = por %p141, %p142
      %p144 = scmp.ne.s32.totalorder %s133, %s134
      %p145 = scmp.eq.s32.totalorder %s26, 0
      %p146 = por %p144, %p145
      %p147 = scmp.ne.s32.totalorder %s133, %s134
      %p148 = scmp.eq.s32.totalorder %s27, 2
      %p149 = por %p147, %p148
      %p151 = scmp.ne.s32.totalorder %s134, %s150
      %p152 = scmp.eq.s32.totalorder %s27, 0
      %p153 = por %p151, %p152
      %p154 = scmp.le.s32.totalorder 1, %s21
      %p155 = scmp.lt.s32.totalorder %s21, 4
      %p156 = pnand %p154, %p155
      %p157 = pneg %p156
      // Predicated region
      $region9: #{tpu_custom_call.1} parent=5 // pred_check
        _
      $region10: #{tpu_custom_call.1} parent=5 // pred_check_branch
        %159 = sbr.rel (%p156) target = $region12
      $region11: #{tpu_custom_call.1} parent=5 // pred_region
        %s160 = ssub.s32 %s21, 1
        // Predicated region
        $region13: #{tpu_custom_call.1} parent=11 // pred_check
          %p161 = pneg %p68
        $region14: #{tpu_custom_call.1} parent=11 // pred_check_branch
          %163 = sbr.rel (%p161) target = $region16
        $region15: #{tpu_custom_call.1} parent=11 // pred_region
          %165 = vsyncadd [#allocation6], 0
          %s167 = sshll.u32 %s1, 4
          %s168 = int_to_ptr.hbm [resolvable:$true] %s167
          %s169 = sshll.u32 [#allocation5], 4
          %s170 = int_to_ptr.vmem [resolvable:$true] %s169
          %172 = dma.hbm_to_vmem [thread:$0]  %s168, 128, %s170, [#allocation6]
        $region16: #{tpu_custom_call.1} parent=11 // pred_fallthru
          _
      $region12: #{tpu_custom_call.1} parent=5 // pred_fallthru
        _
      %p173 = scmp.lt.s32.totalorder %s21, 3
      // Predicated region
      $region17: #{tpu_custom_call.1} parent=5 // pred_check
        %p174 = pneg %p173
      $region18: #{tpu_custom_call.1} parent=5 // pred_check_branch
        %176 = sbr.rel (%p174) target = $region20
      $region19: #{tpu_custom_call.1} parent=5 // pred_region
        // Predicated region
        $region21: #{tpu_custom_call.1} parent=19 // pred_check
          %p177 = pneg %p41
        $region22: #{tpu_custom_call.1} parent=19 // pred_check_branch
          %179 = sbr.rel (%p177) target = $region24
        $region23: #{tpu_custom_call.1} parent=19 // pred_region
          %s180 = sand.u32 %s31, 1
          %s181 = scalar_lea.sflag [#allocation3], %s180
          %s182 = sand.u32 %s31, 1
          %s183 = smul.addr %s182, 160
          %s184 = scalar_lea.vmem [#allocation2], %s183
          %s185 = smul.u32 4, %s21
          %187 = vsyncadd %s181, 0
          %s188 = smul.addr %s185, 8
          %s189 = scalar_lea.hbm %s0, %s188
          %s190 = sshll.u32 %s189, 4
          %s191 = int_to_ptr.hbm [resolvable:$true] %s190
          %s192 = sshll.u32 %s184, 4
          %s193 = int_to_ptr.vmem [resolvable:$true] %s192
          %198 = dma.hbm_to_vmem [thread:$0]  %s191, 2560, %s193, %s181, 1536, 512, 32
        $region24: #{tpu_custom_call.1} parent=19 // pred_fallthru
          _
      $region20: #{tpu_custom_call.1} parent=5 // pred_fallthru
        _
      %p199 = scmp.le.s32.totalorder 1, %s21
      %p200 = scmp.lt.s32.totalorder %s21, 4
      %p201 = pnand %p199, %p200
      %p202 = pneg %p201
      // Predicated region
      $region25: #{tpu_custom_call.1} parent=5 // pred_check
        _
      $region26: #{tpu_custom_call.1} parent=5 // pred_check_branch
        %204 = sbr.rel (%p201) target = $region28
      $region27: #{tpu_custom_call.1} parent=5 // pred_region
        %s205 = ssub.s32 %s21, 1
        %s206 = sand.u32 %s34, 1
        %s207 = scalar_lea.sflag [#allocation3], %s206
        %s208 = sand.u32 %s34, 1
        %s209 = smul.addr %s208, 160
        %s210 = scalar_lea.vmem [#allocation2], %s209
        // Predicated region
        $region29: #{tpu_custom_call.1} parent=27 // pred_check
          %p211 = pneg %p47
        $region30: #{tpu_custom_call.1} parent=27 // pred_check_branch
          %213 = sbr.rel (%p211) target = $region32
        $region31: #{tpu_custom_call.1} parent=27 // pred_region
          %215 = dma.done %s207, 2560
        $region32: #{tpu_custom_call.1} parent=27 // pred_fallthru
          _
        // Predicated region
        $region33: #{tpu_custom_call.1} parent=27 // pred_check
          %p216 = pneg %p68
        $region34: #{tpu_custom_call.1} parent=27 // pred_check_branch
          %218 = sbr.rel (%p216) target = $region36
        $region35: #{tpu_custom_call.1} parent=27 // pred_region
          %220 = dma.done [#allocation6], 128
        $region36: #{tpu_custom_call.1} parent=27 // pred_fallthru
          _
        %s221 = sand.u32 %s34, 1
        %s222 = scalar_lea.sflag [#allocation3], %s221
        %s223 = sand.u32 %s34, 1
        %s224 = smul.addr %s223, 160
        %s225 = scalar_lea.vmem [#allocation2], %s224
        %p226 = pneg %p47
        %p227 = pneg %p44
        %p228 = pneg %p68
        %p229 = pneg %p65
        %p230 = pneg %p94
        %p231 = pneg %p91
        %s232 = sand.u32 %s81, 1
        %s233 = scalar_lea.sflag [#allocation4], %s232
        %s234 = sand.u32 %s81, 1
        %s235 = smul.addr %s234, 32
        %s236 = scalar_lea.vmem [#allocation7], %s235
        %p237 = pneg %p120
        %p238 = pneg %p117
        %s239 = sand.u32 %s26, 1
        %s240 = scalar_lea.sflag [#allocation9], %s239
        %s241 = sand.u32 %s107, 1
        %s242 = smul.addr %s241, 8
        %s243 = scalar_lea.vmem [#allocation8], %s242
        %p244 = pneg %p146
        %p245 = pneg %p143
        %s246 = sand.u32 %s26, 1
        %s247 = scalar_lea.sflag [#allocation9], %s246
        %s248 = sand.u32 %s133, 1
        %s249 = smul.addr %s248, 8
        %s250 = scalar_lea.vmem [#allocation10], %s249
        %s251 = smul.u32 4, %s26
        %s252 = smul.u32 4, %s26
        %v253 = vld [vmem:[#allocation5] sm:$0xff]
        %v254 = vld [vmem:[%s210] sm:$0xff]
        %v255 = vld [vmem:[%s210 + $0x8] sm:$0xff]
        %v256 = vld [vmem:[%s210 + $0x10] sm:$0xff]
        %v257 = vld [vmem:[%s210 + $0x18] sm:$0xff]
        %v258 = vld [vmem:[%s210 + $0x20] sm:$0xff]
        %v259 = vld [vmem:[%s210 + $0x28] sm:$0xff]
        %v260 = vld [vmem:[%s210 + $0x30] sm:$0xff]
        %v261 = vld [vmem:[%s210 + $0x38] sm:$0xff]
        %v262 = vld [vmem:[%s210 + $0x40] sm:$0xff]
        %v263 = vld [vmem:[%s210 + $0x48] sm:$0xff]
        %v264 = vld [vmem:[%s210 + $0x50] sm:$0xff]
        %v265 = vld [vmem:[%s210 + $0x58] sm:$0xff]
        %v266 = vld [vmem:[%s210 + $0x60] sm:$0xff]
        %v267 = vld [vmem:[%s210 + $0x68] sm:$0xff]
        %v268 = vld [vmem:[%s210 + $0x70] sm:$0xff]
        %v269 = vld [vmem:[%s210 + $0x78] sm:$0xff]
        %v270 = vld [vmem:[%s210 + $0x80] sm:$0xf]
        %v271 = vld [vmem:[%s210 + $0x88] sm:$0xf]
        %v272 = vld [vmem:[%s210 + $0x90] sm:$0xf]
        %v273 = vld [vmem:[%s210 + $0x98] sm:$0xf]
        %vm274 = vcmask 293888
        %v276 = vsel %vm274, %v253, 0
        %vm278 = vcmask 1043456
        %v280 = vsel %vm278, %v270, 0
        %v283 = vsel %vm278, %v271, 0
        %v286 = vsel %vm278, %v272, 0
        %v289 = vsel %vm278, %v273, 0
        %291 = vmatpush.msra.mxu0 0.0
        %292 = vmatpush.msra.mxu0 0.0
        %293 = vmatpush.msra.mxu0 0.0
        %294 = vmatpush.msra.mxu0 0.0
        %295 = vmatpush.msra.mxu0 0.0
        %296 = vmatpush.msra.mxu0 0.0
        %297 = vmatpush.msra.mxu0 0.0
        %298 = vmatpush.msra.mxu0 0.0
        %299 = vmatpush.msra.mxu0 0.0
        %300 = vmatpush.msra.mxu0 0.0
        %301 = vmatpush.msra.mxu0 0.0
        %302 = vmatpush.msra.mxu0 %v280
        %303 = vmatpush.msra.mxu0 %v266
        %304 = vmatpush.msra.mxu0 %v262
        %305 = vmatpush.msra.mxu0 %v258
        %306 = vmatpush.msra.mxu0 %v254
        %307 = vmatmul.f32.gmra.mxu0 %v276
        %v308 = vpop.f32.mrf.mxu0
        %v309 = vadd.f32 0.0, %v308
        %310 = vdwg.mxu0
        %311 = vmatpush.msra.mxu0 0.0
        %312 = vmatpush.msra.mxu0 0.0
        %313 = vmatpush.msra.mxu0 0.0
        %314 = vmatpush.msra.mxu0 0.0
        %315 = vmatpush.msra.mxu0 0.0
        %316 = vmatpush.msra.mxu0 0.0
        %317 = vmatpush.msra.mxu0 0.0
        %318 = vmatpush.msra.mxu0 0.0
        %319 = vmatpush.msra.mxu0 0.0
        %320 = vmatpush.msra.mxu0 0.0
        %321 = vmatpush.msra.mxu0 0.0
        %322 = vmatpush.msra.mxu0 %v283
        %323 = vmatpush.msra.mxu0 %v267
        %324 = vmatpush.msra.mxu0 %v263
        %325 = vmatpush.msra.mxu0 %v259
        %326 = vmatpush.msra.mxu0 %v255
        %327 = vmatmul.f32.gmra.mxu0 %v276
        %v328 = vpop.f32.mrf.mxu0
        %v329 = vadd.f32 0.0, %v328
        %330 = vdwg.mxu0
        %331 = vmatpush.msra.mxu0 0.0
        %332 = vmatpush.msra.mxu0 0.0
        %333 = vmatpush.msra.mxu0 0.0
        %334 = vmatpush.msra.mxu0 0.0
        %335 = vmatpush.msra.mxu0 0.0
        %336 = vmatpush.msra.mxu0 0.0
        %337 = vmatpush.msra.mxu0 0.0
        %338 = vmatpush.msra.mxu0 0.0
        %339 = vmatpush.msra.mxu0 0.0
        %340 = vmatpush.msra.mxu0 0.0
        %341 = vmatpush.msra.mxu0 0.0
        %342 = vmatpush.msra.mxu0 %v286
        %343 = vmatpush.msra.mxu0 %v268
        %344 = vmatpush.msra.mxu0 %v264
        %345 = vmatpush.msra.mxu0 %v260
        %346 = vmatpush.msra.mxu0 %v256
        %347 = vmatmul.f32.gmra.mxu0 %v276
        %v348 = vpop.f32.mrf.mxu0
        %v349 = vadd.f32 0.0, %v348
        %350 = vdwg.mxu0
        %351 = vmatpush.msra.mxu0 0.0
        %352 = vmatpush.msra.mxu0 0.0
        %353 = vmatpush.msra.mxu0 0.0
        %354 = vmatpush.msra.mxu0 0.0
        %355 = vmatpush.msra.mxu0 0.0
        %356 = vmatpush.msra.mxu0 0.0
        %357 = vmatpush.msra.mxu0 0.0
        %358 = vmatpush.msra.mxu0 0.0
        %359 = vmatpush.msra.mxu0 0.0
        %360 = vmatpush.msra.mxu0 0.0
        %361 = vmatpush.msra.mxu0 0.0
        %362 = vmatpush.msra.mxu0 %v289
        %363 = vmatpush.msra.mxu0 %v269
        %364 = vmatpush.msra.mxu0 %v265
        %365 = vmatpush.msra.mxu0 %v261
        %366 = vmatpush.msra.mxu0 %v257
        %367 = vmatmul.f32.gmra.mxu0 %v276
        %v368 = vpop.f32.mrf.mxu0
        %v369 = vadd.f32 0.0, %v368
        %370 = vdwg.mxu0
        %371 = vst [vmem:[%s236] sm:$0xff] %v309
        %372 = vst [vmem:[%s236 + $0x8] sm:$0xff] %v329
        %373 = vst [vmem:[%s236 + $0x10] sm:$0xff] %v349
        %374 = vst [vmem:[%s236 + $0x18] sm:$0xff] %v369
        %v375 = vadd.f32 %v309, %v329
        %v376 = vadd.f32 %v375, %v349
        %v377 = vadd.f32 %v376, %v369
        %378 = vadd.xlane.f32.xlu0 %v377
        %v379 = vpop.xlane.xlu0 %378
        %v380 = vmul.f32 %v309, %v309
        %v381 = vmul.f32 %v329, %v329
        %v382 = vmul.f32 %v349, %v349
        %v383 = vmul.f32 %v369, %v369
        %v384 = vadd.f32 %v380, %v381
        %v385 = vadd.f32 %v384, %v382
        %v386 = vadd.f32 %v385, %v383
        %387 = vadd.xlane.f32.xlu0 %v386
        %v388 = vpop.xlane.xlu0 %387
        %389 = vst [vmem:[%s243] sm:$0xff] %v379
        %390 = vst [vmem:[%s250] sm:$0xff] %v388
        %s391 = sand.u32 %s81, 1
        %s392 = scalar_lea.sflag [#allocation4], %s391
        %s393 = sand.u32 %s81, 1
        %s394 = smul.addr %s393, 32
        %s395 = scalar_lea.vmem [#allocation7], %s394
        %s396 = sand.u32 %s26, 1
        %s397 = scalar_lea.sflag [#allocation9], %s396
        %s398 = sand.u32 %s107, 1
        %s399 = smul.addr %s398, 8
        %s400 = scalar_lea.vmem [#allocation8], %s399
        %s401 = sand.u32 %s26, 1
        %s402 = scalar_lea.sflag [#allocation9], %s401
        %s403 = sand.u32 %s133, 1
        %s404 = smul.addr %s403, 8
        %s405 = scalar_lea.vmem [#allocation10], %s404
        // Predicated region
        $region37: #{tpu_custom_call.1} parent=27 // pred_check
          %p406 = pneg %p91
        $region38: #{tpu_custom_call.1} parent=27 // pred_check_branch
          %408 = sbr.rel (%p406) target = $region40
        $region39: #{tpu_custom_call.1} parent=27 // pred_region
          %s409 = smul.u32 4, %s26
          %411 = vsyncadd %s392, 0
          %s412 = smul.addr %s409, 8
          %s413 = scalar_lea.hbm %s2, %s412
          %s415 = sshll.u32 %s395, 4
          %s416 = int_to_ptr.vmem [resolvable:$true] %s415
          %s417 = sshll.u32 %s413, 4
          %s418 = int_to_ptr.hbm [resolvable:$true] %s417
          %420 = dma.vmem_to_hbm [thread:$0]  %s416, 512, %s418, %s392
        $region40: #{tpu_custom_call.1} parent=27 // pred_fallthru
          _
        // Predicated region
        $region41: #{tpu_custom_call.1} parent=27 // pred_check
          %p421 = pneg %p117
        $region42: #{tpu_custom_call.1} parent=27 // pred_check_branch
          %423 = sbr.rel (%p421) target = $region44
        $region43: #{tpu_custom_call.1} parent=27 // pred_region
          %425 = vsyncadd %s397, 0
          %s426 = smul.addr %s26, 8
          %s427 = scalar_lea.hbm %s3, %s426
          %s429 = sshll.u32 %s400, 4
          %s430 = int_to_ptr.vmem [resolvable:$true] %s429
          %s431 = sshll.u32 %s427, 4
          %s432 = int_to_ptr.hbm [resolvable:$true] %s431
          %434 = dma.vmem_to_hbm [thread:$0]  %s430, 128, %s432, %s397
        $region44: #{tpu_custom_call.1} parent=27 // pred_fallthru
          _
        // Predicated region
        $region45: #{tpu_custom_call.1} parent=27 // pred_check
          %p435 = pneg %p143
        $region46: #{tpu_custom_call.1} parent=27 // pred_check_branch
          %437 = sbr.rel (%p435) target = $region48
        $region47: #{tpu_custom_call.1} parent=27 // pred_region
          %439 = vsyncadd %s402, 0
          %s440 = smul.addr %s26, 8
          %s441 = scalar_lea.hbm %s4, %s440
          %s443 = sshll.u32 %s405, 4
          %s444 = int_to_ptr.vmem [resolvable:$true] %s443
          %s445 = sshll.u32 %s441, 4
          %s446 = int_to_ptr.hbm [resolvable:$true] %s445
          %448 = dma.vmem_to_hbm [thread:$0]  %s444, 128, %s446, %s402
        $region48: #{tpu_custom_call.1} parent=27 // pred_fallthru
          _
      $region28: #{tpu_custom_call.1} parent=5 // pred_fallthru
        _
      %p449 = scmp.le.s32.totalorder 2, %s21
      // Predicated region
      $region49: #{tpu_custom_call.1} parent=5 // pred_check
        %p450 = pneg %p449
      $region50: #{tpu_custom_call.1} parent=5 // pred_check_branch
        %452 = sbr.rel (%p450) target = $region52
      $region51: #{tpu_custom_call.1} parent=5 // pred_region
        %s453 = ssub.s32 %s21, 2
        // Predicated region
        $region53: #{tpu_custom_call.1} parent=51 // pred_check
          %p454 = pneg %p97
        $region54: #{tpu_custom_call.1} parent=51 // pred_check_branch
          %456 = sbr.rel (%p454) target = $region56
        $region55: #{tpu_custom_call.1} parent=51 // pred_region
          %s457 = sand.u32 %s82, 1
          %s458 = scalar_lea.sflag [#allocation4], %s457
          %s459 = sand.u32 %s82, 1
          %s460 = smul.addr %s459, 32
          %s461 = scalar_lea.vmem [#allocation7], %s460
          %463 = dma.done %s458, 512
        $region56: #{tpu_custom_call.1} parent=51 // pred_fallthru
          _
        // Predicated region
        $region57: #{tpu_custom_call.1} parent=51 // pred_check
          %p464 = pneg %p123
        $region58: #{tpu_custom_call.1} parent=51 // pred_check_branch
          %466 = sbr.rel (%p464) target = $region60
        $region59: #{tpu_custom_call.1} parent=51 // pred_region
          %s467 = sand.u32 %s27, 1
          %s468 = scalar_lea.sflag [#allocation9], %s467
          %s469 = sand.u32 %s108, 1
          %s470 = smul.addr %s469, 8
          %s471 = scalar_lea.vmem [#allocation8], %s470
          %473 = dma.done %s468, 128
        $region60: #{tpu_custom_call.1} parent=51 // pred_fallthru
          _
        // Predicated region
        $region61: #{tpu_custom_call.1} parent=51 // pred_check
          %p474 = pneg %p149
        $region62: #{tpu_custom_call.1} parent=51 // pred_check_branch
          %476 = sbr.rel (%p474) target = $region64
        $region63: #{tpu_custom_call.1} parent=51 // pred_region
          %s477 = sand.u32 %s27, 1
          %s478 = scalar_lea.sflag [#allocation9], %s477
          %s479 = sand.u32 %s134, 1
          %s480 = smul.addr %s479, 8
          %s481 = scalar_lea.vmem [#allocation10], %s480
          %483 = dma.done %s478, 128
        $region64: #{tpu_custom_call.1} parent=51 // pred_fallthru
          _
      $region52: #{tpu_custom_call.1} parent=5 // pred_fallthru
        _
    $region6: #{tpu_custom_call.1} parent=1 // loop_footer
      %s25 = sadd.s32 1, %s21
    $region7: #{tpu_custom_call.1} parent=1 // loop_footer_branch
      %20 = sbr.rel target = $region3
    $region8: #{tpu_custom_call.1} parent=1 // loop_exit
      _
    %484 = vsyncpa [#allocation3], 1
    %s485 = scalar_lea.sflag [#allocation3], 1
    %486 = vsyncpa %s485, 1
    %487 = vsyncpa [#allocation6], 1
    %488 = vsyncpa [#allocation4], 1
    %s489 = scalar_lea.sflag [#allocation4], 1
    %490 = vsyncpa %s489, 1
    %491 = vsyncpa [#allocation9], 1
    %s492 = scalar_lea.sflag [#allocation9], 1
    %493 = vsyncpa %s492, 1

</llo_original>
